<compile_context>
chip_gen: v7x
topology: tpu7x:2x2x1
jax: 0.10.0
libtpu: 0.0.40
codegen_flags: <defaults>
</compile_context>

<pallas_src>
import jax
import jax.numpy as jnp
from jax.experimental import pallas as pl
from jax.experimental.pallas import tpu as pltpu

ACT_DIM = 64
FIN_EMB = 64
IMG_DIM = 128
HID2_OUT = 128
N_CLASSES = 11
LOGIT_PAD = 64                      # fc_out padded to 64 lanes
PACK_DIM = FIN_EMB + LOGIT_PAD      # packed output width = 128 (lane-dense)
BN_EPS = 1e-5


def _action_lstm_kernel(
    action_ref,                 # [T_BLK, B, 4]        f32
    image_ref,                  # [T_BLK, B, IMG_DIM]  bf16
    hc0_ref,                    # [B, 2*FIN_EMB]       f32   (packed h0 | c0)
    w1_ref, b1_ref,             # hid1: bf16 [4, ACT_DIM], f32 [1, ACT_DIM]
    w2i_ref, w2a_ref,           # hid2 weight pre-split: bf16 [IMG_DIM,128], [ACT_DIM,128]
    gamma_ref, beta_ref,        # BatchNorm1d(128) affine, f32 [1,128]
    wg_ref,                     # fused [wih; whh]: bf16 [IMG_DIM+FIN_EMB, 4*FIN_EMB]
    bgate_ref,                  # merged bias_ih + bias_hh, f32 [1, 4*FIN_EMB]
    wout_ref, bout_ref,         # fc_out padded to 64 cols: bf16 [FIN,64], f32 [1,64]
    out_ref,                    # packed [T_BLK, B, 128]: [cx(64) | logits(11) | zeros]
    state_ref,                  # VMEM scratch f32 [B, 2*FIN_EMB] = [h | c], carried
):
    f32, bf16 = jnp.float32, jnp.bfloat16
    tb = pl.program_id(0)
    n_blk, B, _ = image_ref.shape

    @pl.when(tb == 0)
    def _():
        state_ref[...] = hc0_ref[...]

    # ---- recurrence-independent compute, batched over the whole block --------
    # hid1 + relu for all n_blk steps in one [n_blk*B, 4] x [4, 64] MXU pass.
    a_all = action_ref[...].reshape(n_blk * B, 4).astype(bf16)
    act_emb = jnp.dot(a_all, w1_ref[...], preferred_element_type=f32) + b1_ref[...]
    act_emb = jnp.maximum(act_emb, 0.0).astype(bf16)            # drop1 = identity

    # hid2 for all steps (bias omitted: it cancels exactly under the BatchNorm
    # mean subtraction); drop2 = identity.  Weight is pre-split -> no concat.
    img_all = image_ref[...].reshape(n_blk * B, IMG_DIM)
    hlin = (jnp.dot(img_all, w2i_ref[...], preferred_element_type=f32)
            + jnp.dot(act_emb, w2a_ref[...], preferred_element_type=f32))

    # ---- hoisted broadcasts (JAX does not CSE broadcast_in_dim) ---------------
    gamma = jnp.broadcast_to(gamma_ref[...], (B, HID2_OUT))
    beta = jnp.broadcast_to(beta_ref[...], (B, HID2_OUT))
    bgate = jnp.broadcast_to(bgate_ref[...], (B, 4 * FIN_EMB))
    bout = jnp.broadcast_to(bout_ref[...], (B, LOGIT_PAD))

    hc = state_ref[...]
    hx = hc[:, :FIN_EMB]
    cx = hc[:, FIN_EMB:]

    # ---- recurrent steps: fully unrolled, (hx, cx) carried in vregs -----------
    for i in range(n_blk):
        h = hlin[i * B:(i + 1) * B, :]                          # [B, 128] f32

        # BatchNorm1d(128, track_running_stats=False): per-step batch stats,
        # single-pass variance so both reductions issue back-to-back.
        mean = jnp.mean(h, axis=0, keepdims=True)
        var = jnp.mean(h * h, axis=0, keepdims=True) - mean * mean
        h = (h - mean) * jax.lax.rsqrt(var + BN_EPS) * gamma + beta
        h = jnp.maximum(h, 0.0)                                 # relu ; drop3 = id

        # LSTMCell(128, FIN_EMB): one fused K=192 gate matmul on [x | h_prev].
        xg = jnp.concatenate([h.astype(bf16), hx.astype(bf16)], axis=1)
        gates = jnp.dot(xg, wg_ref[...], preferred_element_type=f32) + bgate
        sig = jax.nn.sigmoid(gates)                 # i, f, o: whole-tensor pass
        g_g = jnp.tanh(gates[:, 2 * FIN_EMB:3 * FIN_EMB])       # tanh on g only
        i_g = sig[:, 0 * FIN_EMB:1 * FIN_EMB]       # PyTorch gate order: i, f, g, o
        f_g = sig[:, 1 * FIN_EMB:2 * FIN_EMB]
        o_g = sig[:, 3 * FIN_EMB:4 * FIN_EMB]
        cx = f_g * cx + i_g * g_g
        hx = o_g * jnp.tanh(cx)

        # fc_out (padded to 64 lanes) + lane-dense packed store.
        logits = jnp.dot(hx.astype(bf16), wout_ref[...],
                         preferred_element_type=f32) + bout
        out_ref[i] = jnp.concatenate([cx, logits], axis=1)      # [B, 128]

    # Single packed state writeback per block (carries h/c to the next block).
    state_ref[...] = jnp.concatenate([hx, cx], axis=1)


def action_lstm_sequence(image_seq, action_seq, h0, c0, kparams, t_blk=8):
    """Run T recurrent steps; T_BLK steps per grid invocation, weights resident.

    image_seq: [T,B,IMG_DIM], action_seq: [T,B,4], h0/c0: [B,FIN_EMB].
    Returns (logits [T,B,11], cx [T,B,FIN_EMB]).
    """
    T, B, _ = image_seq.shape
    t_blk = min(t_blk, T)
    n_grid = (T + t_blk - 1) // t_blk
    t_pad = n_grid * t_blk
    if t_pad != T:                                   # pad tail block (outputs sliced off)
        pad = ((0, t_pad - T), (0, 0), (0, 0))
        image_seq = jnp.pad(image_seq, pad)
        action_seq = jnp.pad(action_seq, pad)
    image_seq = image_seq.astype(jnp.bfloat16)       # cast once; halves image DMA
    hc0 = jnp.concatenate([h0, c0], axis=1)          # packed [B, 2*FIN_EMB]

    const = lambda tb: (0, 0)                        # resident across the grid
    blk3 = lambda d: pl.BlockSpec((t_blk, B, d), lambda tb: (tb, 0, 0))
    weight_specs = [pl.BlockSpec(p.shape, const) for p in kparams]

    packed = pl.pallas_call(
        _action_lstm_kernel,
        grid=(n_grid,),
        in_specs=[blk3(4), blk3(IMG_DIM),
                  pl.BlockSpec((B, 2 * FIN_EMB), const),
                  *weight_specs],
        out_specs=blk3(PACK_DIM),
        out_shape=jax.ShapeDtypeStruct((t_pad, B, PACK_DIM), jnp.float32),
        scratch_shapes=[pltpu.VMEM((B, 2 * FIN_EMB), jnp.float32)],
        compiler_params=pltpu.CompilerParams(
            dimension_semantics=("arbitrary",)),      # recurrence over t
    )(action_seq, image_seq, hc0, *kparams)

    cx = packed[:T, :, :FIN_EMB]
    logits = packed[:T, :, FIN_EMB:FIN_EMB + N_CLASSES]
    return logits, cx


def action_lstm_forward(image, action, h0, c0, kparams):
    """Single-step forward matching actionLSTM.forward -> (logits [B,11], cx [B,64])."""
    logits, cx = action_lstm_sequence(image[None], action[None], h0, c0, kparams)
    return logits[0], cx[0]


# --------------------------- parameter handling -------------------------------

def _xavier_uniform(key, fan_in, fan_out):
    bound = (6.0 / (fan_in + fan_out)) ** 0.5
    return jax.random.uniform(key, (fan_in, fan_out), jnp.float32, -bound, bound)


def init_params(key):
    """f32 params in [in, out] layout (transposed vs. PyTorch).

    The module zero-inits every bias; small random biases are used here so the
    bias code paths are actually exercised (the forward must be correct for any
    trained values)."""
    ks = jax.random.split(key, 11)
    in2 = ACT_DIM + IMG_DIM
    s = 0.1
    return (
        _xavier_uniform(ks[0], 4, ACT_DIM),                               # w1
        s * jax.random.normal(ks[1], (1, ACT_DIM), jnp.float32),          # b1
        _xavier_uniform(ks[2], in2, HID2_OUT),                            # w2
        s * jax.random.normal(ks[3], (1, HID2_OUT), jnp.float32),         # b2
        1.0 + s * jax.random.normal(ks[4], (1, HID2_OUT), jnp.float32),   # bn gamma
        s * jax.random.normal(ks[5], (1, HID2_OUT), jnp.float32),         # bn beta
        _xavier_uniform(ks[6], HID2_OUT, 4 * FIN_EMB),                    # w_ih
        s * jax.random.normal(ks[7], (1, 4 * FIN_EMB), jnp.float32),      # b_ih
        _xavier_uniform(ks[8], FIN_EMB, 4 * FIN_EMB),                     # w_hh
        s * jax.random.normal(ks[9], (1, 4 * FIN_EMB), jnp.float32),      # b_hh
        _xavier_uniform(ks[10], FIN_EMB, N_CLASSES),                      # w_out
        jnp.zeros((1, N_CLASSES), jnp.float32),                           # b_out
    )


def prepare_params(params):
    """Pack/cast the f32 module params into kernel-ready params:
    bf16 matmul weights, split hid2 weight, dropped hid2 bias (cancels in BN),
    fused [wih; whh] gate weight, merged LSTM biases, fc_out padded to 64 lanes."""
    (w1, b1, w2, b2, gamma, beta, wih, bih, whh, bhh, wout, bout) = params
    bf16 = jnp.bfloat16
    w2_img = w2[:IMG_DIM, :]
    w2_act = w2[IMG_DIM:, :]
    wg = jnp.concatenate([wih, whh], axis=0)          # [IMG_DIM+FIN_EMB, 4*FIN_EMB]
    b_gates = bih + bhh
    wout_pad = jnp.zeros((FIN_EMB, LOGIT_PAD), jnp.float32).at[:, :N_CLASSES].set(wout)
    bout_pad = jnp.zeros((1, LOGIT_PAD), jnp.float32).at[:, :N_CLASSES].set(bout)
    return (
        w1.astype(bf16), b1,
        w2_img.astype(bf16), w2_act.astype(bf16),
        gamma, beta,
        wg.astype(bf16), b_gates,
        wout_pad.astype(bf16), bout_pad,
    )


# ------------------------------- reference ------------------------------------

def _reference_step(image, action, h, c, params, match_bf16=False):
    """Pure-JAX forward of the PyTorch module.  With match_bf16=True the matmul
    operands are rounded to bfloat16 first, mirroring the kernel's precision."""
    (w1, b1, w2, b2, gamma, beta, wih, bih, whh, bhh, wout, bout) = params
    q = (lambda x: x.astype(jnp.bfloat16).astype(jnp.float32)) if match_bf16 else (lambda x: x)
    act_emb = jnp.maximum(q(action) @ q(w1) + b1, 0.0)
    x = jnp.concatenate([image, act_emb], axis=1)
    hh = q(x) @ q(w2) + b2
    mean = jnp.mean(hh, axis=0, keepdims=True)
    var = jnp.mean((hh - mean) ** 2, axis=0, keepdims=True)
    hh = jnp.maximum((hh - mean) * jax.lax.rsqrt(var + BN_EPS) * gamma + beta, 0.0)
    gates = q(hh) @ q(wih) + bih + q(h) @ q(whh) + bhh
    i_g = jax.nn.sigmoid(gates[:, 0 * FIN_EMB:1 * FIN_EMB])
    f_g = jax.nn.sigmoid(gates[:, 1 * FIN_EMB:2 * FIN_EMB])
    g_g = jnp.tanh(gates[:, 2 * FIN_EMB:3 * FIN_EMB])
    o_g = jax.nn.sigmoid(gates[:, 3 * FIN_EMB:4 * FIN_EMB])
    cx = f_g * c + i_g * g_g
    hx = o_g * jnp.tanh(cx)
    return q(hx) @ q(wout) + bout, hx, cx


if __name__ == "__main__":
    # TODO(synk): dropout layers are implemented as inference-mode identities.
    B, T = 8, 4
    key = jax.random.PRNGKey(0)
    kp, ki, ka, kh, kc = jax.random.split(key, 5)

    params = init_params(kp)
    kparams = prepare_params(params)

    image_seq = jax.random.normal(ki, (T, B, IMG_DIM), jnp.float32)
    action_seq = jax.random.normal(ka, (T, B, 4), jnp.float32)
    h0 = jax.random.normal(kh, (B, FIN_EMB), jnp.float32)
    c0 = jax.random.normal(kc, (B, FIN_EMB), jnp.float32)

    # ---- single step: exactly the module's forward() -------------------------
    out, cx = jax.block_until_ready(
        action_lstm_forward(image_seq[0], action_seq[0], h0, c0, kparams))
    assert out.shape == (B, N_CLASSES) and cx.shape == (B, FIN_EMB)

    # precision-matched reference (tight check of semantics)
    ref_out_m, _, ref_cx_m = _reference_step(image_seq[0], action_seq[0], h0, c0,
                                             params, match_bf16=True)
    assert jnp.allclose(out, ref_out_m, atol=5e-3, rtol=5e-3)
    assert jnp.allclose(cx, ref_cx_m, atol=5e-3, rtol=5e-3)

    # pure-f32 module reference (loose: bounds the bf16-weight drift)
    ref_out_f, _, ref_cx_f = _reference_step(image_seq[0], action_seq[0], h0, c0,
                                             params, match_bf16=False)
    assert jnp.allclose(out, ref_out_f, atol=1.5e-1, rtol=1.5e-1)
    assert jnp.allclose(cx, ref_cx_f, atol=1.5e-1, rtol=1.5e-1)

    # ---- T-step recurrent run: whole sequence in one grid step ---------------
    # TODO(synk): the T>1 path assumes hx feeds back as the next h0; the module
    # itself only returns (logits, cx) per call.
    logits_seq, cx_seq = jax.block_until_ready(
        action_lstm_sequence(image_seq, action_seq, h0, c0, kparams))
    h, c = h0, c0
    for t in range(T):
        ref_o, h, c = _reference_step(image_seq[t], action_seq[t], h, c,
                                      params, match_bf16=True)
        assert jnp.allclose(logits_seq[t], ref_o, atol=1e-2, rtol=1e-2)
        assert jnp.allclose(cx_seq[t], c, atol=1e-2, rtol=1e-2)

    # ---- multi-block grid (t_blk=3 -> grid=(2,), padded tail): exercises the
    # cross-block VMEM state carry and the T-padding path -----------------------
    logits_mb, cx_mb = jax.block_until_ready(
        action_lstm_sequence(image_seq, action_seq, h0, c0, kparams, t_blk=3))
    assert jnp.allclose(logits_mb, logits_seq, atol=1e-5, rtol=1e-5)
    assert jnp.allclose(cx_mb, cx_seq, atol=1e-5, rtol=1e-5)

    print("KERNEL_OK")
</pallas_src>

<mosaic_0001>
module attributes {stable_mosaic.version = 11 : i64} {
  func.func @_action_lstm_kernel(%arg0: i32, %arg1: memref<1x8x4xf32, #tpu.memory_space<vmem>>, %arg2: memref<1x8x128xbf16, #tpu.memory_space<vmem>>, %arg3: memref<8x128xf32, #tpu.memory_space<vmem>>, %arg4: memref<4x64xbf16, #tpu.memory_space<vmem>>, %arg5: memref<1x64xf32, #tpu.memory_space<vmem>>, %arg6: memref<128x128xbf16, #tpu.memory_space<vmem>>, %arg7: memref<64x128xbf16, #tpu.memory_space<vmem>>, %arg8: memref<1x128xf32, #tpu.memory_space<vmem>>, %arg9: memref<1x128xf32, #tpu.memory_space<vmem>>, %arg10: memref<192x256xbf16, #tpu.memory_space<vmem>>, %arg11: memref<1x256xf32, #tpu.memory_space<vmem>>, %arg12: memref<64x64xbf16, #tpu.memory_space<vmem>>, %arg13: memref<1x64xf32, #tpu.memory_space<vmem>>, %arg14: memref<1x8x128xf32, #tpu.memory_space<vmem>>, %arg15: memref<8x128xf32, #tpu.memory_space<vmem>>) attributes {dimension_semantics = [#tpu.dimension_semantics<arbitrary>], iteration_bounds = array<i64: 1>, scalar_prefetch = 0 : i64, scratch_operands = 1 : i64, tpu.core_type = #tpu.core_type<tc>, window_params = [{transform_indices = @transform_0, window_bounds = array<i64: 1, 8, 4>}, {transform_indices = @transform_1, window_bounds = array<i64: 1, 8, 128>}, {pipeline_mode = #tpu.pipeline_mode<synchronous>, transform_indices = @transform_2, window_bounds = array<i64: 8, 128>}, {pipeline_mode = #tpu.pipeline_mode<synchronous>, transform_indices = @transform_3, window_bounds = array<i64: 4, 64>}, {pipeline_mode = #tpu.pipeline_mode<synchronous>, transform_indices = @transform_4, window_bounds = array<i64: 1, 64>}, {pipeline_mode = #tpu.pipeline_mode<synchronous>, transform_indices = @transform_5, window_bounds = array<i64: 128, 128>}, {pipeline_mode = #tpu.pipeline_mode<synchronous>, transform_indices = @transform_6, window_bounds = array<i64: 64, 128>}, {pipeline_mode = #tpu.pipeline_mode<synchronous>, transform_indices = @transform_7, window_bounds = array<i64: 1, 128>}, {pipeline_mode = #tpu.pipeline_mode<synchronous>, transform_indices = @transform_8, window_bounds = array<i64: 1, 128>}, {pipeline_mode = #tpu.pipeline_mode<synchronous>, transform_indices = @transform_9, window_bounds = array<i64: 192, 256>}, {pipeline_mode = #tpu.pipeline_mode<synchronous>, transform_indices = @transform_10, window_bounds = array<i64: 1, 256>}, {pipeline_mode = #tpu.pipeline_mode<synchronous>, transform_indices = @transform_11, window_bounds = array<i64: 64, 64>}, {pipeline_mode = #tpu.pipeline_mode<synchronous>, transform_indices = @transform_12, window_bounds = array<i64: 1, 64>}, {transform_indices = @transform_13, window_bounds = array<i64: 1, 8, 128>}]} {
    %c0_i32 = arith.constant 0 : i32
    %0 = arith.cmpi eq, %arg0, %c0_i32 : i32
    %1 = arith.extui %0 : i1 to i32
    %c0_i32_0 = arith.constant 0 : i32
    %2 = arith.cmpi ne, %1, %c0_i32_0 : i32
    scf.if %2 {
      %c0_45 = arith.constant 0 : index
      %c0_46 = arith.constant 0 : index
      %89 = vector.load %arg3[%c0_45, %c0_46] : memref<8x128xf32, #tpu.memory_space<vmem>>, vector<8x128xf32>
      %c0_47 = arith.constant 0 : index
      %c0_48 = arith.constant 0 : index
      %90 = vector.load %arg15[%c0_47, %c0_48] : memref<8x128xf32, #tpu.memory_space<vmem>>, vector<8x128xf32>
      tpu.vector_store %arg15[%c0_47, %c0_48], %89 {strides = array<i32>} : memref<8x128xf32, #tpu.memory_space<vmem>>, vector<8x128xf32>,
    } else {
    }
    %c0 = arith.constant 0 : index
    %c0_1 = arith.constant 0 : index
    %c0_2 = arith.constant 0 : index
    %3 = vector.load %arg1[%c0, %c0_1, %c0_2] : memref<1x8x4xf32, #tpu.memory_space<vmem>>, vector<1x8x4xf32>
    %4 = vector.shape_cast %3 : vector<1x8x4xf32> to vector<8x4xf32>
    %5 = arith.truncf %4 : vector<8x4xf32> to vector<8x4xbf16>
    %c0_3 = arith.constant 0 : index
    %c0_4 = arith.constant 0 : index
    %6 = vector.load %arg4[%c0_3, %c0_4] : memref<4x64xbf16, #tpu.memory_space<vmem>>, vector<4x64xbf16>
    %cst = arith.constant dense<0.000000e+00> : vector<8x64xf32>
    %7 = tpu.matmul %5, %6, %cst {dimension_numbers = #tpu.dot_dimension_numbers<[1], [0], [0], [1], [0, 0, 1, 1], [], []>} : vector<8x4xbf16>, vector<4x64xbf16>, vector<8x64xf32> -> vector<8x64xf32>
    %c0_5 = arith.constant 0 : index
    %c0_6 = arith.constant 0 : index
    %8 = vector.load %arg5[%c0_5, %c0_6] : memref<1x64xf32, #tpu.memory_space<vmem>>, vector<1x64xf32>
    %9 = vector.broadcast %8 : vector<1x64xf32> to vector<8x64xf32>
    %10 = arith.addf %7, %9 : vector<8x64xf32>
    %cst_7 = arith.constant 0.000000e+00 : f32
    %11 = vector.broadcast %cst_7 : f32 to vector<8x64xf32>
    %12 = arith.maximumf %10, %11 : vector<8x64xf32>
    %13 = arith.truncf %12 : vector<8x64xf32> to vector<8x64xbf16>
    %c0_8 = arith.constant 0 : index
    %c0_9 = arith.constant 0 : index
    %c0_10 = arith.constant 0 : index
    %14 = vector.load %arg2[%c0_8, %c0_9, %c0_10] : memref<1x8x128xbf16, #tpu.memory_space<vmem>>, vector<1x8x128xbf16>
    %15 = vector.shape_cast %14 : vector<1x8x128xbf16> to vector<8x128xbf16>
    %c0_11 = arith.constant 0 : index
    %c0_12 = arith.constant 0 : index
    %16 = vector.load %arg6[%c0_11, %c0_12] : memref<128x128xbf16, #tpu.memory_space<vmem>>, vector<128x128xbf16>
    %cst_13 = arith.constant dense<0.000000e+00> : vector<8x128xf32>
    %17 = tpu.matmul %15, %16, %cst_13 {dimension_numbers = #tpu.dot_dimension_numbers<[1], [0], [0], [1], [0, 0, 1, 1], [], []>} : vector<8x128xbf16>, vector<128x128xbf16>, vector<8x128xf32> -> vector<8x128xf32>
    %c0_14 = arith.constant 0 : index
    %c0_15 = arith.constant 0 : index
    %18 = vector.load %arg7[%c0_14, %c0_15] : memref<64x128xbf16, #tpu.memory_space<vmem>>, vector<64x128xbf16>
    %cst_16 = arith.constant dense<0.000000e+00> : vector<8x128xf32>
    %19 = tpu.matmul %13, %18, %cst_16 {dimension_numbers = #tpu.dot_dimension_numbers<[1], [0], [0], [1], [0, 0, 1, 1], [], []>} : vector<8x64xbf16>, vector<64x128xbf16>, vector<8x128xf32> -> vector<8x128xf32>
    %20 = arith.addf %17, %19 : vector<8x128xf32>
    %c0_17 = arith.constant 0 : index
    %c0_18 = arith.constant 0 : index
    %21 = vector.load %arg8[%c0_17, %c0_18] : memref<1x128xf32, #tpu.memory_space<vmem>>, vector<1x128xf32>
    %22 = vector.shape_cast %21 : vector<1x128xf32> to vector<1x128xf32>
    %23 = vector.broadcast %22 : vector<1x128xf32> to vector<8x128xf32>
    %c0_19 = arith.constant 0 : index
    %c0_20 = arith.constant 0 : index
    %24 = vector.load %arg9[%c0_19, %c0_20] : memref<1x128xf32, #tpu.memory_space<vmem>>, vector<1x128xf32>
    %25 = vector.shape_cast %24 : vector<1x128xf32> to vector<1x128xf32>
    %26 = vector.broadcast %25 : vector<1x128xf32> to vector<8x128xf32>
    %c0_21 = arith.constant 0 : index
    %c0_22 = arith.constant 0 : index
    %27 = vector.load %arg11[%c0_21, %c0_22] : memref<1x256xf32, #tpu.memory_space<vmem>>, vector<1x256xf32>
    %28 = vector.shape_cast %27 : vector<1x256xf32> to vector<1x256xf32>
    %29 = vector.broadcast %28 : vector<1x256xf32> to vector<8x256xf32>
    %c0_23 = arith.constant 0 : index
    %c0_24 = arith.constant 0 : index
    %30 = vector.load %arg13[%c0_23, %c0_24] : memref<1x64xf32, #tpu.memory_space<vmem>>, vector<1x64xf32>
    %31 = vector.shape_cast %30 : vector<1x64xf32> to vector<1x64xf32>
    %32 = vector.broadcast %31 : vector<1x64xf32> to vector<8x64xf32>
    %c0_25 = arith.constant 0 : index
    %c0_26 = arith.constant 0 : index
    %33 = vector.load %arg15[%c0_25, %c0_26] : memref<8x128xf32, #tpu.memory_space<vmem>>, vector<8x128xf32>
    %34 = vector.extract_strided_slice %33 {offsets = [0, 0], sizes = [8, 64], strides = [1, 1]} : vector<8x128xf32> to vector<8x64xf32>
    %35 = vector.extract_strided_slice %33 {offsets = [0, 64], sizes = [8, 64], strides = [1, 1]} : vector<8x128xf32> to vector<8x64xf32>
    %cst_27 = arith.constant dense<0.000000e+00> : vector<128xf32>
    %36 = vector.multi_reduction <add>, %20, %cst_27 [0] : vector<8x128xf32> to vector<128xf32>
    %37 = vector.shape_cast %36 : vector<128xf32> to vector<1x128xf32>
    %cst_28 = arith.constant 8.000000e+00 : f32
    %38 = vector.broadcast %cst_28 : f32 to vector<1x128xf32>
    %39 = arith.divf %37, %38 : vector<1x128xf32>
    %40 = arith.mulf %20, %20 : vector<8x128xf32>
    %cst_29 = arith.constant dense<0.000000e+00> : vector<128xf32>
    %41 = vector.multi_reduction <add>, %40, %cst_29 [0] : vector<8x128xf32> to vector<128xf32>
    %42 = vector.shape_cast %41 : vector<128xf32> to vector<1x128xf32>
    %cst_30 = arith.constant 8.000000e+00 : f32
    %43 = vector.broadcast %cst_30 : f32 to vector<1x128xf32>
    %44 = arith.divf %42, %43 : vector<1x128xf32>
    %45 = arith.mulf %39, %39 : vector<1x128xf32>
    %46 = arith.subf %44, %45 : vector<1x128xf32>
    %47 = vector.broadcast %39 : vector<1x128xf32> to vector<8x128xf32>
    %48 = arith.subf %20, %47 : vector<8x128xf32>
    %cst_31 = arith.constant 9.99999974E-6 : f32
    %49 = vector.broadcast %cst_31 : f32 to vector<1x128xf32>
    %50 = arith.addf %46, %49 : vector<1x128xf32>
    %51 = math.rsqrt %50 : vector<1x128xf32>
    %52 = vector.broadcast %51 : vector<1x128xf32> to vector<8x128xf32>
    %53 = arith.mulf %48, %52 : vector<8x128xf32>
    %54 = arith.mulf %53, %23 : vector<8x128xf32>
    %55 = arith.addf %54, %26 : vector<8x128xf32>
    %cst_32 = arith.constant 0.000000e+00 : f32
    %56 = vector.broadcast %cst_32 : f32 to vector<8x128xf32>
    %57 = arith.maximumf %55, %56 : vector<8x128xf32>
    %58 = arith.truncf %57 : vector<8x128xf32> to vector<8x128xbf16>
    %59 = arith.truncf %34 : vector<8x64xf32> to vector<8x64xbf16>
    %60 = tpu.concatenate %58, %59 in 1 : vector<8x128xbf16>, vector<8x64xbf16> -> vector<8x192xbf16>
    %c0_33 = arith.constant 0 : index
    %c0_34 = arith.constant 0 : index
    %61 = vector.load %arg10[%c0_33, %c0_34] : memref<192x256xbf16, #tpu.memory_space<vmem>>, vector<192x256xbf16>
    %cst_35 = arith.constant dense<0.000000e+00> : vector<8x256xf32>
    %62 = tpu.matmul %60, %61, %cst_35 {dimension_numbers = #tpu.dot_dimension_numbers<[1], [0], [0], [1], [0, 0, 1, 1], [], []>} : vector<8x192xbf16>, vector<192x256xbf16>, vector<8x256xf32> -> vector<8x256xf32>
    %63 = arith.addf %62, %29 : vector<8x256xf32>
    %64 = arith.negf %63 : vector<8x256xf32>
    %65 = math.exp %64 : vector<8x256xf32>
    %cst_36 = arith.constant 1.000000e+00 : f32
    %66 = vector.broadcast %cst_36 : f32 to vector<8x256xf32>
    %67 = arith.addf %66, %65 : vector<8x256xf32>
    %68 = arith.divf %66, %67 : vector<8x256xf32>
    %69 = vector.extract_strided_slice %63 {offsets = [0, 128], sizes = [8, 64], strides = [1, 1]} : vector<8x256xf32> to vector<8x64xf32>
    %70 = math.tanh %69 : vector<8x64xf32>
    %71 = vector.extract_strided_slice %68 {offsets = [0, 0], sizes = [8, 64], strides = [1, 1]} : vector<8x256xf32> to vector<8x64xf32>
    %72 = vector.extract_strided_slice %68 {offsets = [0, 64], sizes = [8, 64], strides = [1, 1]} : vector<8x256xf32> to vector<8x64xf32>
    %73 = vector.extract_strided_slice %68 {offsets = [0, 192], sizes = [8, 64], strides = [1, 1]} : vector<8x256xf32> to vector<8x64xf32>
    %74 = arith.mulf %72, %35 : vector<8x64xf32>
    %75 = arith.mulf %71, %70 : vector<8x64xf32>
    %76 = arith.addf %74, %75 : vector<8x64xf32>
    %77 = math.tanh %76 : vector<8x64xf32>
    %78 = arith.mulf %73, %77 : vector<8x64xf32>
    %79 = arith.truncf %78 : vector<8x64xf32> to vector<8x64xbf16>
    %c0_37 = arith.constant 0 : index
    %c0_38 = arith.constant 0 : index
    %80 = vector.load %arg12[%c0_37, %c0_38] : memref<64x64xbf16, #tpu.memory_space<vmem>>, vector<64x64xbf16>
    %cst_39 = arith.constant dense<0.000000e+00> : vector<8x64xf32>
    %81 = tpu.matmul %79, %80, %cst_39 {dimension_numbers = #tpu.dot_dimension_numbers<[1], [0], [0], [1], [0, 0, 1, 1], [], []>} : vector<8x64xbf16>, vector<64x64xbf16>, vector<8x64xf32> -> vector<8x64xf32>
    %82 = arith.addf %81, %32 : vector<8x64xf32>
    %83 = tpu.concatenate %76, %82 in 1 : vector<8x64xf32>, vector<8x64xf32> -> vector<8x128xf32>
    %c0_40 = arith.constant 0 : index
    %c0_41 = arith.constant 0 : index
    %c0_42 = arith.constant 0 : index
    %84 = vector.load %arg14[%c0_40, %c0_41, %c0_42] : memref<1x8x128xf32, #tpu.memory_space<vmem>>, vector<1x8x128xf32>
    %85 = vector.shape_cast %84 : vector<1x8x128xf32> to vector<8x128xf32>
    %86 = vector.shape_cast %83 : vector<8x128xf32> to vector<1x8x128xf32>
    tpu.vector_store %arg14[%c0_40, %c0_41, %c0_42], %86 {strides = array<i32>} : memref<1x8x128xf32, #tpu.memory_space<vmem>>, vector<1x8x128xf32>,
    %87 = tpu.concatenate %78, %76 in 1 : vector<8x64xf32>, vector<8x64xf32> -> vector<8x128xf32>
    %c0_43 = arith.constant 0 : index
    %c0_44 = arith.constant 0 : index
    %88 = vector.load %arg15[%c0_43, %c0_44] : memref<8x128xf32, #tpu.memory_space<vmem>>, vector<8x128xf32>
    tpu.vector_store %arg15[%c0_43, %c0_44], %87 {strides = array<i32>} : memref<8x128xf32, #tpu.memory_space<vmem>>, vector<8x128xf32>,
    return
  }
  func.func @transform_0(%arg0: i32) -> (i32, i32, i32) {
    %c0_i32 = arith.constant 0 : i32
    %c0_i32_0 = arith.constant 0 : i32
    %c0_i32_1 = arith.constant 0 : i32
    return %arg0, %c0_i32, %c0_i32_0 : i32, i32, i32
  }
  func.func @transform_1(%arg0: i32) -> (i32, i32, i32) {
    %c0_i32 = arith.constant 0 : i32
    %c0_i32_0 = arith.constant 0 : i32
    %c0_i32_1 = arith.constant 0 : i32
    return %arg0, %c0_i32, %c0_i32_0 : i32, i32, i32
  }
  func.func @transform_2(%arg0: i32) -> (i32, i32) {
    %c0_i32 = arith.constant 0 : i32
    %c0_i32_0 = arith.constant 0 : i32
    %c0_i32_1 = arith.constant 0 : i32
    return %c0_i32, %c0_i32_0 : i32, i32
  }
  func.func @transform_3(%arg0: i32) -> (i32, i32) {
    %c0_i32 = arith.constant 0 : i32
    %c0_i32_0 = arith.constant 0 : i32
    %c0_i32_1 = arith.constant 0 : i32
    return %c0_i32, %c0_i32_0 : i32, i32
  }
  func.func @transform_4(%arg0: i32) -> (i32, i32) {
    %c0_i32 = arith.constant 0 : i32
    %c0_i32_0 = arith.constant 0 : i32
    %c0_i32_1 = arith.constant 0 : i32
    return %c0_i32, %c0_i32_0 : i32, i32
  }
  func.func @transform_5(%arg0: i32) -> (i32, i32) {
    %c0_i32 = arith.constant 0 : i32
    %c0_i32_0 = arith.constant 0 : i32
    %c0_i32_1 = arith.constant 0 : i32
    return %c0_i32, %c0_i32_0 : i32, i32
  }
  func.func @transform_6(%arg0: i32) -> (i32, i32) {
    %c0_i32 = arith.constant 0 : i32
    %c0_i32_0 = arith.constant 0 : i32
    %c0_i32_1 = arith.constant 0 : i32
    return %c0_i32, %c0_i32_0 : i32, i32
  }
  func.func @transform_7(%arg0: i32) -> (i32, i32) {
    %c0_i32 = arith.constant 0 : i32
    %c0_i32_0 = arith.constant 0 : i32
    %c0_i32_1 = arith.constant 0 : i32
    return %c0_i32, %c0_i32_0 : i32, i32
  }
  func.func @transform_8(%arg0: i32) -> (i32, i32) {
    %c0_i32 = arith.constant 0 : i32
    %c0_i32_0 = arith.constant 0 : i32
    %c0_i32_1 = arith.constant 0 : i32
    return %c0_i32, %c0_i32_0 : i32, i32
  }
  func.func @transform_9(%arg0: i32) -> (i32, i32) {
    %c0_i32 = arith.constant 0 : i32
    %c0_i32_0 = arith.constant 0 : i32
    %c0_i32_1 = arith.constant 0 : i32
    return %c0_i32, %c0_i32_0 : i32, i32
  }
  func.func @transform_10(%arg0: i32) -> (i32, i32) {
    %c0_i32 = arith.constant 0 : i32
    %c0_i32_0 = arith.constant 0 : i32
    %c0_i32_1 = arith.constant 0 : i32
    return %c0_i32, %c0_i32_0 : i32, i32
  }
  func.func @transform_11(%arg0: i32) -> (i32, i32) {
    %c0_i32 = arith.constant 0 : i32
    %c0_i32_0 = arith.constant 0 : i32
    %c0_i32_1 = arith.constant 0 : i32
    return %c0_i32, %c0_i32_0 : i32, i32
  }
  func.func @transform_12(%arg0: i32) -> (i32, i32) {
    %c0_i32 = arith.constant 0 : i32
    %c0_i32_0 = arith.constant 0 : i32
    %c0_i32_1 = arith.constant 0 : i32
    return %c0_i32, %c0_i32_0 : i32, i32
  }
  func.func @transform_13(%arg0: i32) -> (i32, i32, i32) {
    %c0_i32 = arith.constant 0 : i32
    %c0_i32_0 = arith.constant 0 : i32
    %c0_i32_1 = arith.constant 0 : i32
    return %arg0, %c0_i32, %c0_i32_0 : i32, i32, i32
  }
}

</mosaic_0001>

<llo_original>
// kernel: tpu_custom_call.1
$region0: #{tpu_custom_call.1}
  #allocation0 [shape = 'u32[]', space=smem, size = 0x4, offset = 0x4, fixed_abs, tag = 'smem constant byte address 0x4 - core index']
  #allocation1 [shape = 'u32[144,128]{1,0:T(1,128)}', space=vmem, size = 0x12000, scoped, tag = 'internal scratch']
  #allocation2 [shape = 'f32[8,128]{1,0:T(8,128)}', space=vmem, size = 0x1000, scoped, tag = 'scratch operand']
  %s0 = inlined_call_operand.vmem [shape: f32[1,8,4], index: 0, kind: input, shape index: {}]
  %s1 = inlined_call_operand.hbm [shape: bf16[1,8,128], index: 1, kind: input, shape index: {}]
  %s2 = inlined_call_operand.hbm [shape: f32[8,128], index: 2, kind: input, shape index: {}]
  %s3 = inlined_call_operand.vmem [shape: bf16[4,64], index: 3, kind: input, shape index: {}]
  %s4 = inlined_call_operand.hbm [shape: f32[1,64], index: 4, kind: input, shape index: {}]
  %s5 = inlined_call_operand.hbm [shape: bf16[128,128], index: 5, kind: input, shape index: {}]
  %s6 = inlined_call_operand.vmem [shape: bf16[64,128], index: 6, kind: input, shape index: {}]
  %s7 = inlined_call_operand.vmem [shape: f32[1,128], index: 7, kind: input, shape index: {}]
  %s8 = inlined_call_operand.vmem [shape: f32[1,128], index: 8, kind: input, shape index: {}]
  %s9 = inlined_call_operand.hbm [shape: bf16[192,256], index: 9, kind: input, shape index: {}]
  %s10 = inlined_call_operand.vmem [shape: f32[1,256], index: 10, kind: input, shape index: {}]
  %s11 = inlined_call_operand.hbm [shape: bf16[64,64], index: 11, kind: input, shape index: {}]
  %s12 = inlined_call_operand.vmem [shape: f32[1,64], index: 12, kind: input, shape index: {}]
  %s13 = inlined_call_operand.hbm [shape: f32[1,8,128], index: 13, kind: output, shape index: {}]
  %s14 = sld [smem:[#allocation0]]
  $region90: #{tpu_custom_call.1} parent=0
    _
  %s16 = ssub.s32 1, %s14
  %s17 = scalar_select 0, %s16, %s14
  $region1: #{tpu_custom_call.1} parent=0
    #allocation3 [shape = 'u8[2048]{0}', space=vmem, size = 0x800, scoped, tag = 'input window, operand 1, single buffered']
    #allocation4 [shape = 's32[1]{0}', space=sflag, size = 0x4, scoped, tag = 'scoped memory for tpu_custom_call.1']
    #allocation5 [shape = 's32[1]{0}', space=sflag, size = 0x4, scoped, tag = 'scoped memory for tpu_custom_call.1']
    #allocation6 [shape = 'u8[4096]{0}', space=vmem, size = 0x1000, scoped, tag = 'input window, operand 2, single buffered']
    #allocation7 [shape = 's32[1]{0}', space=sflag, size = 0x4, scoped, tag = 'scoped memory for tpu_custom_call.1']
    #allocation8 [shape = 'u8[512]{0}', space=vmem, size = 0x400, scoped, tag = 'input window, operand 4, single buffered']
    #allocation9 [shape = 'u8[32768]{0}', space=vmem, size = 0x8000, scoped, tag = 'input window, operand 5, single buffered']
    #allocation10 [shape = 's32[1]{0}', space=sflag, size = 0x4, scoped, tag = 'scoped memory for tpu_custom_call.1']
    #allocation11 [shape = 'u8[98304]{0}', space=vmem, size = 0x18000, scoped, tag = 'input window, operand 9, single buffered']
    #allocation12 [shape = 'u8[16384]{0}', space=vmem, size = 0x4000, scoped, tag = 'input window, operand 11, single buffered']
    #allocation13 [shape = 's32[1]{0}', space=sflag, size = 0x4, scoped, tag = 'scoped memory for tpu_custom_call.1']
    #allocation14 [shape = 'u8[4096]{0}', space=vmem, size = 0x1000, scoped, tag = 'output window, operand 0, single buffered']
    %18 = vsyncpa [#allocation4], 0
    %19 = vsyncpa [#allocation7], 0
    %20 = vsyncpa [#allocation10], 0
    %21 = vsyncpa [#allocation13], 0
    %22 = vsyncpa [#allocation5], 0
    // Predicated region
    $region2: #{tpu_custom_call.1} parent=1 // pred_check
      _
    $region3: #{tpu_custom_call.1} parent=1 // pred_check_branch
      %24 = sbr.rel (0) target = $region5
    $region4: #{tpu_custom_call.1} parent=1 // pred_region
      _
    $region5: #{tpu_custom_call.1} parent=1 // pred_fallthru
      _
    // Predicated region
    $region6: #{tpu_custom_call.1} parent=1 // pred_check
      _
    $region7: #{tpu_custom_call.1} parent=1 // pred_check_branch
      %26 = sbr.rel (0) target = $region9
    $region8: #{tpu_custom_call.1} parent=1 // pred_region
      %s28 = ssub.s32 64, 64
      %29 = vsyncadd [#allocation4], %s28
      %s31 = sshll.u32 [#allocation3], 4
      %s32 = int_to_ptr.vmem [resolvable:$true] %s31
      %34 = dma.hbm_to_vmem [thread:$0]  %s1, 64, %s32, [#allocation4]
    $region9: #{tpu_custom_call.1} parent=1 // pred_fallthru
      _
    // Predicated region
    $region10: #{tpu_custom_call.1} parent=1 // pred_check
      _
    $region11: #{tpu_custom_call.1} parent=1 // pred_check_branch
      %36 = sbr.rel (0) target = $region13
    $region12: #{tpu_custom_call.1} parent=1 // pred_region
      %s38 = ssub.s32 128, 128
      %39 = vsyncadd [#allocation7], %s38
      %s41 = sshll.u32 [#allocation6], 4
      %s42 = int_to_ptr.vmem [resolvable:$true] %s41
      %44 = dma.hbm_to_vmem [thread:$0]  %s2, 128, %s42, [#allocation7]
    $region13: #{tpu_custom_call.1} parent=1 // pred_fallthru
      _
    // Predicated region
    $region14: #{tpu_custom_call.1} parent=1 // pred_check
      _
    $region15: #{tpu_custom_call.1} parent=1 // pred_check_branch
      %46 = sbr.rel (0) target = $region17
    $region16: #{tpu_custom_call.1} parent=1 // pred_region
      _
    $region17: #{tpu_custom_call.1} parent=1 // pred_fallthru
      _
    // Predicated region
    $region18: #{tpu_custom_call.1} parent=1 // pred_check
      _
    $region19: #{tpu_custom_call.1} parent=1 // pred_check_branch
      %48 = sbr.rel (0) target = $region21
    $region20: #{tpu_custom_call.1} parent=1 // pred_region
      %s50 = ssub.s32 16, 16
      %51 = vsyncadd [#allocation7], %s50
      %s53 = sshll.u32 [#allocation8], 4
      %s54 = int_to_ptr.vmem [resolvable:$true] %s53
      %56 = dma.hbm_to_vmem [thread:$0]  %s4, 16, %s54, [#allocation7]
    $region21: #{tpu_custom_call.1} parent=1 // pred_fallthru
      _
    // Predicated region
    $region22: #{tpu_custom_call.1} parent=1 // pred_check
      _
    $region23: #{tpu_custom_call.1} parent=1 // pred_check_branch
      %58 = sbr.rel (0) target = $region25
    $region24: #{tpu_custom_call.1} parent=1 // pred_region
      %s60 = ssub.s32 1024, 1024
      %61 = vsyncadd [#allocation10], %s60
      %s62 = sshll.u32 [#allocation9], 4
      %s63 = int_to_ptr.vmem [resolvable:$true] %s62
      %68 = dma.hbm_to_vmem [thread:$0]  %s5, 1024, %s63, [#allocation10], 64, 64, 4
    $region25: #{tpu_custom_call.1} parent=1 // pred_fallthru
      _
    // Predicated region
    $region26: #{tpu_custom_call.1} parent=1 // pred_check
      _
    $region27: #{tpu_custom_call.1} parent=1 // pred_check_branch
      %70 = sbr.rel (0) target = $region29
    $region28: #{tpu_custom_call.1} parent=1 // pred_region
      _
    $region29: #{tpu_custom_call.1} parent=1 // pred_fallthru
      _
    // Predicated region
    $region30: #{tpu_custom_call.1} parent=1 // pred_check
      _
    $region31: #{tpu_custom_call.1} parent=1 // pred_check_branch
      %72 = sbr.rel (0) target = $region33
    $region32: #{tpu_custom_call.1} parent=1 // pred_region
      _
    $region33: #{tpu_custom_call.1} parent=1 // pred_fallthru
      _
    // Predicated region
    $region34: #{tpu_custom_call.1} parent=1 // pred_check
      _
    $region35: #{tpu_custom_call.1} parent=1 // pred_check_branch
      %74 = sbr.rel (0) target = $region37
    $region36: #{tpu_custom_call.1} parent=1 // pred_region
      _
    $region37: #{tpu_custom_call.1} parent=1 // pred_fallthru
      _
    // Predicated region
    $region38: #{tpu_custom_call.1} parent=1 // pred_check
      _
    $region39: #{tpu_custom_call.1} parent=1 // pred_check_branch
      %76 = sbr.rel (0) target = $region41
    $region40: #{tpu_custom_call.1} parent=1 // pred_region
      %s78 = ssub.s32 3072, 3072
      %79 = vsyncadd [#allocation10], %s78
      %s80 = sshll.u32 [#allocation11], 4
      %s81 = int_to_ptr.vmem [resolvable:$true] %s80
      %86 = dma.hbm_to_vmem [thread:$0]  %s9, 3072, %s81, [#allocation10], 128, 128, 8
    $region41: #{tpu_custom_call.1} parent=1 // pred_fallthru
      _
    // Predicated region
    $region42: #{tpu_custom_call.1} parent=1 // pred_check
      _
    $region43: #{tpu_custom_call.1} parent=1 // pred_check_branch
      %88 = sbr.rel (0) target = $region45
    $region44: #{tpu_custom_call.1} parent=1 // pred_region
      _
    $region45: #{tpu_custom_call.1} parent=1 // pred_fallthru
      _
    // Predicated region
    $region46: #{tpu_custom_call.1} parent=1 // pred_check
      _
    $region47: #{tpu_custom_call.1} parent=1 // pred_check_branch
      %90 = sbr.rel (0) target = $region49
    $region48: #{tpu_custom_call.1} parent=1 // pred_region
      %s92 = ssub.s32 512, 512
      %93 = vsyncadd [#allocation13], %s92
      %s94 = sshll.u32 [#allocation12], 4
      %s95 = int_to_ptr.vmem [resolvable:$true] %s94
      %100 = dma.hbm_to_vmem [thread:$0]  %s11, 512, %s95, [#allocation13], 64, 64, 4
    $region49: #{tpu_custom_call.1} parent=1 // pred_fallthru
      _
    // Predicated region
    $region50: #{tpu_custom_call.1} parent=1 // pred_check
      _
    $region51: #{tpu_custom_call.1} parent=1 // pred_check_branch
      %102 = sbr.rel (0) target = $region53
    $region52: #{tpu_custom_call.1} parent=1 // pred_region
      _
    $region53: #{tpu_custom_call.1} parent=1 // pred_fallthru
      _
    // Predicated region
    $region54: #{tpu_custom_call.1} parent=1 // pred_check
      _
    $region55: #{tpu_custom_call.1} parent=1 // pred_check_branch
      %104 = sbr.rel (0) target = $region57
    $region56: #{tpu_custom_call.1} parent=1 // pred_region
      %105 = dma.done [#allocation4], 64
    $region57: #{tpu_custom_call.1} parent=1 // pred_fallthru
      _
    // Predicated region
    $region58: #{tpu_custom_call.1} parent=1 // pred_check
      _
    $region59: #{tpu_custom_call.1} parent=1 // pred_check_branch
      %107 = sbr.rel (0) target = $region61
    $region60: #{tpu_custom_call.1} parent=1 // pred_region
      %108 = dma.done [#allocation7], 128
    $region61: #{tpu_custom_call.1} parent=1 // pred_fallthru
      _
    // Predicated region
    $region62: #{tpu_custom_call.1} parent=1 // pred_check
      _
    $region63: #{tpu_custom_call.1} parent=1 // pred_check_branch
      %110 = sbr.rel (0) target = $region65
    $region64: #{tpu_custom_call.1} parent=1 // pred_region
      %111 = dma.done [#allocation7], 16
    $region65: #{tpu_custom_call.1} parent=1 // pred_fallthru
      _
    // Predicated region
    $region66: #{tpu_custom_call.1} parent=1 // pred_check
      _
    $region67: #{tpu_custom_call.1} parent=1 // pred_check_branch
      %113 = sbr.rel (0) target = $region69
    $region68: #{tpu_custom_call.1} parent=1 // pred_region
      %114 = dma.done [#allocation10], 1024
    $region69: #{tpu_custom_call.1} parent=1 // pred_fallthru
      _
    // Predicated region
    $region70: #{tpu_custom_call.1} parent=1 // pred_check
      _
    $region71: #{tpu_custom_call.1} parent=1 // pred_check_branch
      %116 = sbr.rel (0) target = $region73
    $region72: #{tpu_custom_call.1} parent=1 // pred_region
      %117 = dma.done [#allocation10], 3072
    $region73: #{tpu_custom_call.1} parent=1 // pred_fallthru
      _
    // Predicated region
    $region74: #{tpu_custom_call.1} parent=1 // pred_check
      _
    $region75: #{tpu_custom_call.1} parent=1 // pred_check_branch
      %119 = sbr.rel (0) target = $region77
    $region76: #{tpu_custom_call.1} parent=1 // pred_region
      %120 = dma.done [#allocation13], 512
    $region77: #{tpu_custom_call.1} parent=1 // pred_fallthru
      _
    %p122 = scmp.eq.s32.totalorder 0, 0
    // Predicated region
    $region78: #{tpu_custom_call.1} parent=1 // pred_check
      %p123 = pneg %p122
    $region79: #{tpu_custom_call.1} parent=1 // pred_check_branch
      %125 = sbr.rel (%p123) target = $region81
    $region80: #{tpu_custom_call.1} parent=1 // pred_region
      %v126 = vld [vmem:[#allocation6] sm:$0xff]
      %127 = vst [vmem:[#allocation2] sm:$0xff] %v126
    $region81: #{tpu_custom_call.1} parent=1 // pred_fallthru
      _
    %v128 = vld [vmem:[%s0] sm:$0xff]
    %v129 = vpack.c.bf16 %v128, %v128
    %v130 = vld [vmem:[%s3] sm:$0x3]
    %v131 = vld [vmem:[#allocation8] sm:$0x1]
    %v133 = vlaneseq
    %v134 = vshrl.u32 %v133, 7
    %v135 = vsub.s32 0, %v134
    %v136 = vrot.slane %v131, %v135
    %vm138 = vcmask 31744
    %v140 = vsel %vm138, %v129, 0
    %vm142 = vcmask 1041408
    %v144 = vsel %vm142, %v130, 0
    %146 = vmatprep.subr.bf16.mxu0 0
    %147 = vmatpush1.bf16.msra.mxu0 %v144
    %148 = vmatprep.subr.bf16.mxu0 0
    %149 = vmatpush1.bf16.msra.mxu0 0
    %150 = vmatprep.subr.bf16.mxu0 0
    %151 = vmatpush1.bf16.msra.mxu0 0
    %152 = vmatprep.subr.bf16.mxu0 0
    %153 = vmatpush1.bf16.msra.mxu0 0
    %154 = vmatprep.subr.bf16.mxu0 0
    %155 = vmatpush1.bf16.msra.mxu0 0
    %156 = vmatprep.subr.bf16.mxu0 0
    %157 = vmatpush1.bf16.msra.mxu0 0
    %158 = vmatprep.subr.bf16.mxu0 0
    %159 = vmatpush1.bf16.msra.mxu0 0
    %160 = vmatprep.subr.bf16.mxu0 0
    %161 = vmatpush1.bf16.msra.mxu0 0
    %162 = vmatprep.subr.bf16.mxu0 0
    %163 = vmatpush1.bf16.msra.mxu0 0
    %164 = vmatprep.subr.bf16.mxu0 0
    %165 = vmatpush1.bf16.msra.mxu0 0
    %166 = vmatprep.subr.bf16.mxu0 0
    %167 = vmatpush1.bf16.msra.mxu0 0
    %168 = vmatprep.subr.bf16.mxu0 0
    %169 = vmatpush1.bf16.msra.mxu0 0
    %170 = vmatprep.subr.bf16.mxu0 0
    %171 = vmatpush1.bf16.msra.mxu0 0
    %172 = vmatprep.subr.bf16.mxu0 0
    %173 = vmatpush1.bf16.msra.mxu0 0
    %174 = vmatprep.subr.bf16.mxu0 0
    %175 = vmatpush1.bf16.msra.mxu0 0
    %176 = vmatprep.subr.bf16.mxu0 0
    %177 = vmatpush1.bf16.msra.mxu0 0
    %178 = vmatprep.mubr.bf16.mxu0 0
    %179 = vmatmul.mubr.bf16.gmra.mrb[0].mxu0 %v140
    %v180 = vpop.f32.mrb[0].mxu0
    %v181 = vadd.f32 %v136, %v180
    %v182 = vpop.f32.mrb[0].mxu0
    %v183 = vpop.f32.mrb[0].mxu0
    %v184 = vpop.f32.mrb[0].mxu0
    %185 = vdwg.mxu0
    %v186 = vmax.f32 %v181, 0.0
    %v187 = vpack.c.bf16 %v186, %v186
    %v188 = vld [vmem:[#allocation3] sm:$0xf]
    %v189 = vld [vmem:[#allocation9] sm:$0xf]
    %v190 = vld [vmem:[#allocation9 + $0x4] sm:$0xf]
    %v191 = vld [vmem:[#allocation9 + $0x8] sm:$0xf]
    %v192 = vld [vmem:[#allocation9 + $0xc] sm:$0xf]
    %v193 = vld [vmem:[#allocation9 + $0x10] sm:$0xf]
    %v194 = vld [vmem:[#allocation9 + $0x14] sm:$0xf]
    %v195 = vld [vmem:[#allocation9 + $0x18] sm:$0xf]
    %v196 = vld [vmem:[#allocation9 + $0x1c] sm:$0xf]
    %v197 = vld [vmem:[#allocation9 + $0x20] sm:$0xf]
    %v198 = vld [vmem:[#allocation9 + $0x24] sm:$0xf]
    %v199 = vld [vmem:[#allocation9 + $0x28] sm:$0xf]
    %v200 = vld [vmem:[#allocation9 + $0x2c] sm:$0xf]
    %v201 = vld [vmem:[#allocation9 + $0x30] sm:$0xf]
    %v202 = vld [vmem:[#allocation9 + $0x34] sm:$0xf]
    %v203 = vld [vmem:[#allocation9 + $0x38] sm:$0xf]
    %v204 = vld [vmem:[#allocation9 + $0x3c] sm:$0xf]
    %v205 = vld [vmem:[%s6] sm:$0xf]
    %v206 = vld [vmem:[%s6 + $0x4] sm:$0xf]
    %v207 = vld [vmem:[%s6 + $0x8] sm:$0xf]
    %v208 = vld [vmem:[%s6 + $0xc] sm:$0xf]
    %v209 = vld [vmem:[%s6 + $0x10] sm:$0xf]
    %v210 = vld [vmem:[%s6 + $0x14] sm:$0xf]
    %v211 = vld [vmem:[%s6 + $0x18] sm:$0xf]
    %v212 = vld [vmem:[%s6 + $0x1c] sm:$0xf]
    %v221 = vunpack.c.l.b16 %v205
    %v222 = vunpack.c.l.b16 %v206
    %v223 = vunpack.c.l.b16 %v207
    %v224 = vunpack.c.l.b16 %v208
    %v225 = vunpack.c.l.b16 %v209
    %v226 = vunpack.c.l.b16 %v210
    %v227 = vunpack.c.l.b16 %v211
    %v228 = vunpack.c.l.b16 %v212
    %v229 = vpack.c.b16 %v222, %v221
    %v230 = vpack.c.b16 %v224, %v223
    %v231 = vpack.c.b16 %v226, %v225
    %v232 = vpack.c.b16 %v228, %v227
    %vm237 = vcmask 523264
    %v239 = vsel %vm237, %v187, 0
    %241 = vmatprep.subr.bf16.mxu0 0
    %242 = vmatpush1.bf16.msra.mxu0 %v229
    %243 = vmatprep.subr.bf16.mxu0 0
    %244 = vmatpush1.bf16.msra.mxu0 %v230
    %245 = vmatprep.subr.bf16.mxu0 0
    %246 = vmatpush1.bf16.msra.mxu0 %v231
    %247 = vmatprep.subr.bf16.mxu0 0
    %248 = vmatpush1.bf16.msra.mxu0 %v232
    %249 = vmatprep.subr.bf16.mxu0 0
    %250 = vmatpush1.bf16.msra.mxu0 0
    %251 = vmatprep.subr.bf16.mxu0 0
    %252 = vmatpush1.bf16.msra.mxu0 0
    %253 = vmatprep.subr.bf16.mxu0 0
    %254 = vmatpush1.bf16.msra.mxu0 0
    %255 = vmatprep.subr.bf16.mxu0 0
    %256 = vmatpush1.bf16.msra.mxu0 0
    %257 = vmatprep.subr.bf16.mxu0 0
    %258 = vmatpush1.bf16.msra.mxu0 0
    %259 = vmatprep.subr.bf16.mxu0 0
    %260 = vmatpush1.bf16.msra.mxu0 0
    %261 = vmatprep.subr.bf16.mxu0 0
    %262 = vmatpush1.bf16.msra.mxu0 0
    %263 = vmatprep.subr.bf16.mxu0 0
    %264 = vmatpush1.bf16.msra.mxu0 0
    %265 = vmatprep.subr.bf16.mxu0 0
    %266 = vmatpush1.bf16.msra.mxu0 0
    %267 = vmatprep.subr.bf16.mxu0 0
    %268 = vmatpush1.bf16.msra.mxu0 0
    %269 = vmatprep.subr.bf16.mxu0 0
    %270 = vmatpush1.bf16.msra.mxu0 0
    %271 = vmatprep.subr.bf16.mxu0 0
    %272 = vmatpush1.bf16.msra.mxu0 0
    %273 = vmatprep.mubr.bf16.mxu0 0
    %274 = vmatmul.mubr.bf16.gmra.mrb[0].mxu0 %v239
    %v275 = vpop.f32.mrb[0].mxu0
    %v276 = vadd.f32 0.0, %v275
    %v277 = vpop.f32.mrb[0].mxu0
    %v278 = vpop.f32.mrb[0].mxu0
    %v279 = vpop.f32.mrb[0].mxu0
    %280 = vdwg.mxu0
    %v297 = vunpack.c.l.b16 %v189
    %v298 = vunpack.c.l.b16 %v190
    %v299 = vunpack.c.l.b16 %v191
    %v300 = vunpack.c.l.b16 %v192
    %v301 = vunpack.c.l.b16 %v193
    %v302 = vunpack.c.l.b16 %v194
    %v303 = vunpack.c.l.b16 %v195
    %v304 = vunpack.c.l.b16 %v196
    %v305 = vunpack.c.l.b16 %v197
    %v306 = vunpack.c.l.b16 %v198
    %v307 = vunpack.c.l.b16 %v199
    %v308 = vunpack.c.l.b16 %v200
    %v309 = vunpack.c.l.b16 %v201
    %v310 = vunpack.c.l.b16 %v202
    %v311 = vunpack.c.l.b16 %v203
    %v312 = vunpack.c.l.b16 %v204
    %v313 = vpack.c.b16 %v298, %v297
    %v314 = vpack.c.b16 %v300, %v299
    %v315 = vpack.c.b16 %v302, %v301
    %v316 = vpack.c.b16 %v304, %v303
    %v317 = vpack.c.b16 %v306, %v305
    %v318 = vpack.c.b16 %v308, %v307
    %v319 = vpack.c.b16 %v310, %v309
    %v320 = vpack.c.b16 %v312, %v311
    %329 = vmatprep.subr.bf16.mxu0 0
    %330 = vmatpush1.bf16.msra.mxu0 %v313
    %331 = vmatprep.subr.bf16.mxu0 0
    %332 = vmatpush1.bf16.msra.mxu0 %v314
    %333 = vmatprep.subr.bf16.mxu0 0
    %334 = vmatpush1.bf16.msra.mxu0 %v315
    %335 = vmatprep.subr.bf16.mxu0 0
    %336 = vmatpush1.bf16.msra.mxu0 %v316
    %337 = vmatprep.subr.bf16.mxu0 0
    %338 = vmatpush1.bf16.msra.mxu0 %v317
    %339 = vmatprep.subr.bf16.mxu0 0
    %340 = vmatpush1.bf16.msra.mxu0 %v318
    %341 = vmatprep.subr.bf16.mxu0 0
    %342 = vmatpush1.bf16.msra.mxu0 %v319
    %343 = vmatprep.subr.bf16.mxu0 0
    %344 = vmatpush1.bf16.msra.mxu0 %v320
    %345 = vmatprep.subr.bf16.mxu0 0
    %346 = vmatpush1.bf16.msra.mxu0 0
    %347 = vmatprep.subr.bf16.mxu0 0
    %348 = vmatpush1.bf16.msra.mxu0 0
    %349 = vmatprep.subr.bf16.mxu0 0
    %350 = vmatpush1.bf16.msra.mxu0 0
    %351 = vmatprep.subr.bf16.mxu0 0
    %352 = vmatpush1.bf16.msra.mxu0 0
    %353 = vmatprep.subr.bf16.mxu0 0
    %354 = vmatpush1.bf16.msra.mxu0 0
    %355 = vmatprep.subr.bf16.mxu0 0
    %356 = vmatpush1.bf16.msra.mxu0 0
    %357 = vmatprep.subr.bf16.mxu0 0
    %358 = vmatpush1.bf16.msra.mxu0 0
    %359 = vmatprep.subr.bf16.mxu0 0
    %360 = vmatpush1.bf16.msra.mxu0 0
    %361 = vmatprep.mubr.bf16.mxu0 0
    %362 = vmatmul.mubr.bf16.gmra.mrb[0].mxu0 %v188
    %v363 = vpop.f32.mrb[0].mxu0
    %v364 = vadd.f32 %v276, %v363
    %v365 = vpop.f32.mrb[0].mxu0
    %v366 = vpop.f32.mrb[0].mxu0
    %v367 = vpop.f32.mrb[0].mxu0
    %368 = vdwg.mxu0
    %v369 = vld [vmem:[%s7] sm:$0x1]
    %v371 = vlaneseq
    %v372 = vshrl.u32 %v371, 7
    %v373 = vsub.s32 0, %v372
    %v374 = vrot.slane %v369, %v373
    %v376 = vld [vmem:[%s8] sm:$0x1]
    %v378 = vlaneseq
    %v379 = vshrl.u32 %v378, 7
    %v380 = vsub.s32 0, %v379
    %v381 = vrot.slane %v376, %v380
    %v383 = vld [vmem:[%s10] sm:$0x3]
    %v385 = vlaneseq
    %v386 = vshrl.u32 %v385, 7
    %v387 = vsub.s32 0, %v386
    %v388 = vrot.slane %v383, %v387
    %v389 = vlaneseq
    %v390 = vshrl.u32 %v389, 7
    %v391 = vsub.s32 1, %v390
    %v392 = vrot.slane %v383, %v391
    %v395 = vld [vmem:[%s12] sm:$0x1]
    %v397 = vlaneseq
    %v398 = vshrl.u32 %v397, 7
    %v399 = vsub.s32 0, %v398
    %v400 = vrot.slane %v395, %v399
    %v402 = vld [vmem:[#allocation2] sm:$0xff]
    %v403 = vrot.slane %v364, 4
    %v404 = vadd.f32 %v364, %v403
    %v405 = vrot.slane %v404, 2
    %v406 = vadd.f32 %v404, %v405
    %v407 = vrot.slane %v406, 1
    %v408 = vadd.f32 %v406, %v407
    %v409 = vrcp.pop 8.0
    %v410 = vmul.f32 %v408, %v409
    %v411 = vmul.f32 %v364, %v364
    %v412 = vrot.slane %v411, 4
    %v413 = vadd.f32 %v411, %v412
    %v414 = vrot.slane %v413, 2
    %v415 = vadd.f32 %v413, %v414
    %v416 = vrot.slane %v415, 1
    %v417 = vadd.f32 %v415, %v416
    %v418 = vmul.f32 %v417, %v409
    %v419 = vmul.f32 %v410, %v410
    %v420 = vsub.f32 %v418, %v419
    %v421 = vsub.f32 %v364, %v410
    %v422 = vadd.f32 %v420, 1e-05
    %v423 = vrsqrt.pop %v422
    %v424 = vmul.f32 %v421, %v423
    %v425 = vmul.f32 %v424, %v374
    %v426 = vadd.f32 %v425, %v381
    %v427 = vmax.f32 %v426, 0.0
    %v428 = vpack.c.bf16 %v427, %v427
    %v429 = vpack.c.bf16 %v402, %v402
    %v430 = vld [vmem:[#allocation11] sm:$0xff]
    %v431 = vld [vmem:[#allocation11 + $0x8] sm:$0xff]
    %v432 = vld [vmem:[#allocation11 + $0x10] sm:$0xff]
    %v433 = vld [vmem:[#allocation11 + $0x18] sm:$0xff]
    %v434 = vld [vmem:[#allocation11 + $0x20] sm:$0xff]
    %v435 = vld [vmem:[#allocation11 + $0x28] sm:$0xff]
    %v436 = vld [vmem:[#allocation11 + $0x30] sm:$0xff]
    %v437 = vld [vmem:[#allocation11 + $0x38] sm:$0xff]
    %v438 = vld [vmem:[#allocation11 + $0x40] sm:$0xff]
    %v439 = vld [vmem:[#allocation11 + $0x48] sm:$0xff]
    %v440 = vld [vmem:[#allocation11 + $0x50] sm:$0xff]
    %v441 = vld [vmem:[#allocation11 + $0x58] sm:$0xff]
    %v442 = vld [vmem:[#allocation11 + $0x60] sm:$0xff]
    %v443 = vld [vmem:[#allocation11 + $0x68] sm:$0xff]
    %v444 = vld [vmem:[#allocation11 + $0x70] sm:$0xff]
    %v445 = vld [vmem:[#allocation11 + $0x78] sm:$0xff]
    %v446 = vld [vmem:[#allocation11 + $0x80] sm:$0xff]
    %v447 = vld [vmem:[#allocation11 + $0x88] sm:$0xff]
    %v448 = vld [vmem:[#allocation11 + $0x90] sm:$0xff]
    %v449 = vld [vmem:[#allocation11 + $0x98] sm:$0xff]
    %v450 = vld [vmem:[#allocation11 + $0xa0] sm:$0xff]
    %v451 = vld [vmem:[#allocation11 + $0xa8] sm:$0xff]
    %v452 = vld [vmem:[#allocation11 + $0xb0] sm:$0xff]
    %v453 = vld [vmem:[#allocation11 + $0xb8] sm:$0xff]
    %v478 = vunpack.c.l.b16 %v430
    %v479 = vunpack.c.h.b16 %v430
    %v480 = vunpack.c.l.b16 %v431
    %v481 = vunpack.c.h.b16 %v431
    %v482 = vunpack.c.l.b16 %v432
    %v483 = vunpack.c.h.b16 %v432
    %v484 = vunpack.c.l.b16 %v433
    %v485 = vunpack.c.h.b16 %v433
    %v486 = vunpack.c.l.b16 %v434
    %v487 = vunpack.c.h.b16 %v434
    %v488 = vunpack.c.l.b16 %v435
    %v489 = vunpack.c.h.b16 %v435
    %v490 = vunpack.c.l.b16 %v436
    %v491 = vunpack.c.h.b16 %v436
    %v492 = vunpack.c.l.b16 %v437
    %v493 = vunpack.c.h.b16 %v437
    %v494 = vunpack.c.l.b16 %v438
    %v495 = vunpack.c.h.b16 %v438
    %v496 = vunpack.c.l.b16 %v439
    %v497 = vunpack.c.h.b16 %v439
    %v498 = vunpack.c.l.b16 %v440
    %v499 = vunpack.c.h.b16 %v440
    %v500 = vunpack.c.l.b16 %v441
    %v501 = vunpack.c.h.b16 %v441
    %v502 = vunpack.c.l.b16 %v442
    %v503 = vunpack.c.h.b16 %v442
    %v504 = vunpack.c.l.b16 %v443
    %v505 = vunpack.c.h.b16 %v443
    %v506 = vunpack.c.l.b16 %v444
    %v507 = vunpack.c.h.b16 %v444
    %v508 = vunpack.c.l.b16 %v445
    %v509 = vunpack.c.h.b16 %v445
    %v510 = vunpack.c.l.b16 %v446
    %v511 = vunpack.c.h.b16 %v446
    %v512 = vunpack.c.l.b16 %v447
    %v513 = vunpack.c.h.b16 %v447
    %v514 = vunpack.c.l.b16 %v448
    %v515 = vunpack.c.h.b16 %v448
    %v516 = vunpack.c.l.b16 %v449
    %v517 = vunpack.c.h.b16 %v449
    %v518 = vunpack.c.l.b16 %v450
    %v519 = vunpack.c.h.b16 %v450
    %v520 = vunpack.c.l.b16 %v451
    %v521 = vunpack.c.h.b16 %v451
    %v522 = vunpack.c.l.b16 %v452
    %v523 = vunpack.c.h.b16 %v452
    %v524 = vunpack.c.l.b16 %v453
    %v525 = vunpack.c.h.b16 %v453
    %v526 = vpack.c.b16 %v480, %v478
    %v527 = vpack.c.b16 %v481, %v479
    %v528 = vpack.c.b16 %v484, %v482
    %v529 = vpack.c.b16 %v485, %v483
    %v530 = vpack.c.b16 %v488, %v486
    %v531 = vpack.c.b16 %v489, %v487
    %v532 = vpack.c.b16 %v492, %v490
    %v533 = vpack.c.b16 %v493, %v491
    %v534 = vpack.c.b16 %v496, %v494
    %v535 = vpack.c.b16 %v497, %v495
    %v536 = vpack.c.b16 %v500, %v498
    %v537 = vpack.c.b16 %v501, %v499
    %v538 = vpack.c.b16 %v504, %v502
    %v539 = vpack.c.b16 %v505, %v503
    %v540 = vpack.c.b16 %v508, %v506
    %v541 = vpack.c.b16 %v509, %v507
    %v542 = vpack.c.b16 %v512, %v510
    %v543 = vpack.c.b16 %v513, %v511
    %v544 = vpack.c.b16 %v516, %v514
    %v545 = vpack.c.b16 %v517, %v515
    %v546 = vpack.c.b16 %v520, %v518
    %v547 = vpack.c.b16 %v521, %v519
    %v548 = vpack.c.b16 %v524, %v522
    %v549 = vpack.c.b16 %v525, %v523
    %v575 = vsel %vm237, %v429, 0
    %577 = vmatprep.subr.bf16.mxu0 %v527
    %578 = vmatpush1.bf16.msra.mxu0 %v526
    %579 = vmatprep.subr.bf16.mxu0 %v529
    %580 = vmatpush1.bf16.msra.mxu0 %v528
    %581 = vmatprep.subr.bf16.mxu0 %v531
    %582 = vmatpush1.bf16.msra.mxu0 %v530
    %583 = vmatprep.subr.bf16.mxu0 %v533
    %584 = vmatpush1.bf16.msra.mxu0 %v532
    %585 = vmatprep.subr.bf16.mxu0 %v535
    %586 = vmatpush1.bf16.msra.mxu0 %v534
    %587 = vmatprep.subr.bf16.mxu0 %v537
    %588 = vmatpush1.bf16.msra.mxu0 %v536
    %589 = vmatprep.subr.bf16.mxu0 %v539
    %590 = vmatpush1.bf16.msra.mxu0 %v538
    %591 = vmatprep.subr.bf16.mxu0 %v541
    %592 = vmatpush1.bf16.msra.mxu0 %v540
    %593 = vmatprep.subr.bf16.mxu0 %v543
    %594 = vmatpush1.bf16.msra.mxu0 %v542
    %595 = vmatprep.subr.bf16.mxu0 %v545
    %596 = vmatpush1.bf16.msra.mxu0 %v544
    %597 = vmatprep.subr.bf16.mxu0 %v547
    %598 = vmatpush1.bf16.msra.mxu0 %v546
    %599 = vmatprep.subr.bf16.mxu0 %v549
    %600 = vmatpush1.bf16.msra.mxu0 %v548
    %601 = vmatprep.subr.bf16.mxu0 0
    %602 = vmatpush1.bf16.msra.mxu0 0
    %603 = vmatprep.subr.bf16.mxu0 0
    %604 = vmatpush1.bf16.msra.mxu0 0
    %605 = vmatprep.subr.bf16.mxu0 0
    %606 = vmatpush1.bf16.msra.mxu0 0
    %607 = vmatprep.subr.bf16.mxu0 0
    %608 = vmatpush1.bf16.msra.mxu0 0
    %609 = vmatprep.mubr.bf16.mxu0 %v575
    %610 = vmatmul.mubr.bf16.gmra.mrb[0].mxu0 %v428
    %v611 = vpop.f32.mrb[0].mxu0
    %v612 = vadd.f32 %v388, %v611
    %v613 = vpop.f32.mrb[0].mxu0
    %v614 = vadd.f32 %v392, %v613
    %v615 = vpop.f32.mrb[0].mxu0
    %v616 = vpop.f32.mrb[0].mxu0
    %617 = vdwg.mxu0
    %v618 = vxor.u32 %v612, 2147483648
    %v619 = vxor.u32 %v614, 2147483648
    %v620 = vmul.f32 %v618, 1.442695
    %v621 = vpow.pop %v620
    %v622 = vmul.f32 %v619, 1.442695
    %v623 = vpow.pop %v622
    %v624 = vadd.f32 %v621, 1.0
    %v625 = vadd.f32 %v623, 1.0
    %v626 = vrcp.pop %v624
    %v627 = vmul.f32 1.0, %v626
    %v628 = vrcp.pop %v625
    %v629 = vmul.f32 1.0, %v628
    %v630 = vtanh.pop %v614
    %v631 = vmul.f32 %v627, %v402
    %v632 = vmul.f32 %v627, %v630
    %634 = vrot.lane.b32.xlu0 %v632, 64
    %v635 = vpop.permute.xlu0 %634
    %v637 = vadd.f32 %v631, %v635
    %v638 = vtanh.pop %v637
    %v639 = vmul.f32 %v629, %v638
    %v640 = vpack.c.bf16 %v639, %v639
    %v641 = vld [vmem:[#allocation12] sm:$0xf]
    %v642 = vld [vmem:[#allocation12 + $0x4] sm:$0xf]
    %v643 = vld [vmem:[#allocation12 + $0x8] sm:$0xf]
    %v644 = vld [vmem:[#allocation12 + $0xc] sm:$0xf]
    %v645 = vld [vmem:[#allocation12 + $0x10] sm:$0xf]
    %v646 = vld [vmem:[#allocation12 + $0x14] sm:$0xf]
    %v647 = vld [vmem:[#allocation12 + $0x18] sm:$0xf]
    %v648 = vld [vmem:[#allocation12 + $0x1c] sm:$0xf]
    %650 = vrot.lane.b32.xlu0 %v640, 64
    %v651 = vpop.permute.xlu0 %650
    %v660 = vunpack.c.l.b16 %v641
    %v661 = vunpack.c.l.b16 %v642
    %v662 = vunpack.c.l.b16 %v643
    %v663 = vunpack.c.l.b16 %v644
    %v664 = vunpack.c.l.b16 %v645
    %v665 = vunpack.c.l.b16 %v646
    %v666 = vunpack.c.l.b16 %v647
    %v667 = vunpack.c.l.b16 %v648
    %v668 = vpack.c.b16 %v661, %v660
    %v669 = vpack.c.b16 %v663, %v662
    %v670 = vpack.c.b16 %v665, %v664
    %v671 = vpack.c.b16 %v667, %v666
    %v677 = vsel %vm237, %v651, 0
    %679 = vmatprep.subr.bf16.mxu0 0
    %680 = vmatpush1.bf16.msra.mxu0 %v668
    %681 = vmatprep.subr.bf16.mxu0 0
    %682 = vmatpush1.bf16.msra.mxu0 %v669
    %683 = vmatprep.subr.bf16.mxu0 0
    %684 = vmatpush1.bf16.msra.mxu0 %v670
    %685 = vmatprep.subr.bf16.mxu0 0
    %686 = vmatpush1.bf16.msra.mxu0 %v671
    %687 = vmatprep.subr.bf16.mxu0 0
    %688 = vmatpush1.bf16.msra.mxu0 0
    %689 = vmatprep.subr.bf16.mxu0 0
    %690 = vmatpush1.bf16.msra.mxu0 0
    %691 = vmatprep.subr.bf16.mxu0 0
    %692 = vmatpush1.bf16.msra.mxu0 0
    %693 = vmatprep.subr.bf16.mxu0 0
    %694 = vmatpush1.bf16.msra.mxu0 0
    %695 = vmatprep.subr.bf16.mxu0 0
    %696 = vmatpush1.bf16.msra.mxu0 0
    %697 = vmatprep.subr.bf16.mxu0 0
    %698 = vmatpush1.bf16.msra.mxu0 0
    %699 = vmatprep.subr.bf16.mxu0 0
    %700 = vmatpush1.bf16.msra.mxu0 0
    %701 = vmatprep.subr.bf16.mxu0 0
    %702 = vmatpush1.bf16.msra.mxu0 0
    %703 = vmatprep.subr.bf16.mxu0 0
    %704 = vmatpush1.bf16.msra.mxu0 0
    %705 = vmatprep.subr.bf16.mxu0 0
    %706 = vmatpush1.bf16.msra.mxu0 0
    %707 = vmatprep.subr.bf16.mxu0 0
    %708 = vmatpush1.bf16.msra.mxu0 0
    %709 = vmatprep.subr.bf16.mxu0 0
    %710 = vmatpush1.bf16.msra.mxu0 0
    %711 = vmatprep.mubr.bf16.mxu0 0
    %712 = vmatmul.mubr.bf16.gmra.mrb[0].mxu0 %v677
    %v713 = vpop.f32.mrb[0].mxu0
    %v714 = vadd.f32 %v400, %v713
    %v715 = vpop.f32.mrb[0].mxu0
    %v716 = vpop.f32.mrb[0].mxu0
    %v717 = vpop.f32.mrb[0].mxu0
    %718 = vdwg.mxu0
    %720 = vrot.lane.b32.xlu0 %v637, 64
    %v721 = vpop.permute.xlu0 %720
    %724 = vrot.lane.b32.xlu0 %v714, 64
    %v725 = vpop.permute.xlu0 %724
    %v727 = vsel %vm237, %v721, %v725
    %728 = vst [vmem:[#allocation14] sm:$0xff] %v727
    %730 = vrot.lane.b32.xlu0 %v639, 64
    %v731 = vpop.permute.xlu0 %730
    %v733 = vsel %vm237, %v731, %v637
    %734 = vst [vmem:[#allocation2] sm:$0xff] %v733
    // Predicated region
    $region82: #{tpu_custom_call.1} parent=1 // pred_check
      _
    $region83: #{tpu_custom_call.1} parent=1 // pred_check_branch
      %736 = sbr.rel (0) target = $region85
    $region84: #{tpu_custom_call.1} parent=1 // pred_region
      %s738 = ssub.s32 128, 128
      %739 = vsyncadd [#allocation5], %s738
      %s741 = sshll.u32 [#allocation14], 4
      %s742 = int_to_ptr.vmem [resolvable:$true] %s741
      %744 = dma.vmem_to_hbm [thread:$0]  %s742, 128, %s13, [#allocation5]
    $region85: #{tpu_custom_call.1} parent=1 // pred_fallthru
      _
    // Predicated region
    $region86: #{tpu_custom_call.1} parent=1 // pred_check
      _
    $region87: #{tpu_custom_call.1} parent=1 // pred_check_branch
      %746 = sbr.rel (0) target = $region89
    $region88: #{tpu_custom_call.1} parent=1 // pred_region
      %747 = dma.done [#allocation5], 128
    $region89: #{tpu_custom_call.1} parent=1 // pred_fallthru
      _
    %748 = vsyncpa [#allocation4], 1
    %749 = vsyncpa [#allocation7], 1
    %750 = vsyncpa [#allocation10], 1
    %751 = vsyncpa [#allocation13], 1
    %752 = vsyncpa [#allocation5], 1

</llo_original>
